<compile_context>
chip_gen: v7x
topology: tpu7x:2x2x1
jax: 0.10.0
libtpu: 0.0.40
codegen_flags: <defaults>
</compile_context>

<pallas_src>
import jax
import jax.numpy as jnp
from jax.experimental import pallas as pl
from jax.experimental.pallas import tpu as pltpu


def _round_up(x, m):
    return ((x + m - 1) // m) * m


def _vmem_capacity_bytes():
    try:
        info = pltpu.get_tpu_info()
        cap = getattr(info, "vmem_capacity_bytes", None)
        if cap:
            return int(cap)
    except Exception:
        pass
    return 128 * 1024 * 1024  # conservative fallback (v5e/v6e physical VMEM)


def _block_vmem_bytes(tc, tg, n_emb, in_dtype, out_dtype):
    """Honest double-buffered VMEM estimate (incl. bf16 sublane-16 padding)."""
    in_item = jnp.dtype(in_dtype).itemsize
    out_item = jnp.dtype(out_dtype).itemsize
    sub_in = 8 * max(1, 4 // in_item)     # 8 (f32), 16 (bf16), 32 (8-bit)
    sub_out = 8 * max(1, 4 // out_item)
    lanes = _round_up(tg, 128)
    emb = 2 * tc * _round_up(n_emb, sub_in) * lanes * in_item        # double-buffered
    out = 2 * _round_up(tc, sub_out) * lanes * out_item              # double-buffered
    par = 2 * (_round_up(n_emb, 8) * lanes * 4 + 8 * lanes * 4)      # w + b, f32, double-buffered
    return emb + out + par


def _embedding_to_expression_kernel(emb_ref, w_ref, b_ref, o_ref):
    # emb_ref : (TC, E, TG)  embedding tile, genes on lanes (lane-dense)
    # w_ref   : (E, TG)      gathered gene weights for this gene tile (f32)
    # b_ref   : (1, TG)      gathered gene biases  for this gene tile (f32)
    # o_ref   : (TC, TG)     output tile (cells x genes, PyTorch layout)
    n_emb = w_ref.shape[0]
    w = w_ref[...].astype(jnp.float32)          # hoisted: loaded once per tile
    acc = jnp.zeros(o_ref.shape, jnp.float32)
    # Tiny static unroll over the embedding dimension: pure VPU multiply-adds,
    # per-gene weight row broadcast along sublanes (cells). No XLU, no MXU.
    for e in range(n_emb):
        acc = acc + emb_ref[:, e, :].astype(jnp.float32) * w[e:e + 1, :]
    o_ref[...] = (acc + b_ref[...].astype(jnp.float32)).astype(o_ref.dtype)


def embedding_to_expression(cell_gene_embedding_ceg, gene_ix, weight1, bias1, *,
                            tile_cells=1024, tile_genes=512, out_dtype=jnp.float32):
    """Pallas forward pass.

    cell_gene_embedding_ceg : (C, E, G)  float32 or bfloat16 (no wrapper cast)
    gene_ix                 : (G,)       int32
    weight1                 : (n_genes, E) float32
    bias1                   : (n_genes,)   float32
    returns                 : (C, G) out_dtype   (same layout as the PyTorch module)
    """
    C, E, G = cell_gene_embedding_ceg.shape

    # --- glue: gather per-gene parameters for this gene minibatch (tiny arrays).
    w_g = jnp.take(weight1, gene_ix, axis=0)                 # (G, E)
    b_g = jnp.take(bias1, gene_ix, axis=0)                   # (G,)
    w_t = jnp.transpose(w_g, (1, 0)).astype(jnp.float32)     # (E, G)
    b_t = b_g.reshape(1, G).astype(jnp.float32)              # (1, G)

    # --- tile selection: lane-dense gene tiles, large cell tiles, no padding.
    if G <= 128:
        tg = G                                   # full extent (allowed by Mosaic)
    else:
        tg = min(int(tile_genes), (G // 128) * 128)
        tg = max(128, (tg // 128) * 128)
    if C <= int(tile_cells):
        tc = C                                   # full extent
    else:
        tc = max(8, (int(tile_cells) // 8) * 8)

    # --- generation-aware VMEM budget (leave headroom, esp. on v7x's 64 MiB).
    cap = _vmem_capacity_bytes()
    budget = min(96 << 20, int(cap * 0.70))
    while _block_vmem_bytes(tc, tg, E, cell_gene_embedding_ceg.dtype, out_dtype) > budget and tc > 64:
        tc = max(8, ((tc // 2) // 8) * 8)
    while _block_vmem_bytes(tc, tg, E, cell_gene_embedding_ceg.dtype, out_dtype) > budget and tg > 128:
        tg = max(128, ((tg // 2) // 128) * 128)
    need = _block_vmem_bytes(tc, tg, E, cell_gene_embedding_ceg.dtype, out_dtype)
    vmem_limit = min(int(cap * 0.75), max(32 << 20, need + (4 << 20)))

    # --- grid: gene tiles outer (so w/b blocks stay resident), cell tiles inner.
    n_gene_blocks = pl.cdiv(G, tg)
    n_cell_blocks = pl.cdiv(C, tc)

    out = pl.pallas_call(
        _embedding_to_expression_kernel,
        out_shape=jax.ShapeDtypeStruct((C, G), out_dtype),
        grid_spec=pltpu.PrefetchScalarGridSpec(
            num_scalar_prefetch=0,
            grid=(n_gene_blocks, n_cell_blocks),
            in_specs=[
                pl.BlockSpec((tc, E, tg), lambda g, c: (c, 0, g)),
                pl.BlockSpec((E, tg), lambda g, c: (0, g)),
                pl.BlockSpec((1, tg), lambda g, c: (0, g)),
            ],
            out_specs=pl.BlockSpec((tc, tg), lambda g, c: (c, g)),
        ),
        compiler_params=pltpu.CompilerParams(
            dimension_semantics=("parallel", "parallel"),
            vmem_limit_bytes=vmem_limit,
        ),
    )(cell_gene_embedding_ceg, w_t, b_t)
    return out


def embedding_to_expression_cge(cell_gene_embedding, gene_ix, weight1, bias1, **kwargs):
    """Compat shim for the PyTorch-native (C, G, E) layout.

    # TODO(synk): costs one extra HBM pass (transpose) on a bandwidth-bound op;
    # prefer having the upstream embedder emit (C, E, G) and calling the fast path.
    """
    emb_ceg = jnp.transpose(cell_gene_embedding, (0, 2, 1))
    return embedding_to_expression(emb_ceg, gene_ix, weight1, bias1, **kwargs)


def init_params(n_genes, n_embedding_dimensions=5, initialization="default"):
    """Deterministic parameter init mirroring EmbeddingToExpression.__init__."""
    bias1 = jnp.zeros((n_genes,), dtype=jnp.float32)
    if initialization == "ones":
        weight1 = jnp.ones((n_genes, n_embedding_dimensions), dtype=jnp.float32)
    elif initialization == "default":
        w = jnp.zeros((n_genes, n_embedding_dimensions), dtype=jnp.float32)
        w = w.at[:, :5].set(1.0)
        w = w.at[:, -1].set(-1.0)
        weight1 = w
    else:
        raise ValueError(initialization)
    return weight1, bias1


def _reference(emb_ceg, gene_ix, weight1, bias1):
    # out[c, g] = sum_e emb[c, e, g] * weight1[gene_ix[g], e] + bias1[gene_ix[g]]
    w_g = jnp.take(weight1, gene_ix, axis=0)   # (G, E)
    b_g = jnp.take(bias1, gene_ix, axis=0)     # (G,)
    return jnp.einsum("ceg,ge->cg", emb_ceg.astype(jnp.float32), w_g) + b_g[None, :]


if __name__ == "__main__":
    n_genes_total = 10
    n_emb = 5
    n_cells = 16
    n_genes_batch = 4

    weight1, bias1 = init_params(n_genes_total, n_emb, initialization="default")

    key = jax.random.PRNGKey(0)
    k_emb, k_ix, k_b = jax.random.split(key, 3)
    # Embedding generated directly in the kernel's (C, E, G) layout contract.
    emb_ceg = jax.random.normal(k_emb, (n_cells, n_emb, n_genes_batch), dtype=jnp.float32)
    gene_ix = jax.random.randint(k_ix, (n_genes_batch,), 0, n_genes_total, dtype=jnp.int32)
    bias1 = 0.1 * jax.random.normal(k_b, (n_genes_total,), dtype=jnp.float32)

    ref = _reference(emb_ceg, gene_ix, weight1, bias1)

    # 1) fast path: (C, E, G) input, (C, G) output, no layout plumbing.
    out = jax.block_until_ready(embedding_to_expression(emb_ceg, gene_ix, weight1, bias1))
    assert out.shape == (n_cells, n_genes_batch)
    assert jnp.allclose(out, ref, atol=1e-5, rtol=1e-5), "mismatch vs. pure-JAX reference"

    # 2) compat shim for the PyTorch-native (C, G, E) layout (same numerics).
    emb_cge = jnp.transpose(emb_ceg, (0, 2, 1))
    out_cge = jax.block_until_ready(
        embedding_to_expression_cge(emb_cge, gene_ix, weight1, bias1))
    assert jnp.allclose(out_cge, ref, atol=1e-5, rtol=1e-5), "compat-path mismatch"

    # 3) ragged cell tail (C not a multiple of the cell tile): exercises the
    #    cdiv grid + masked boundary store path (no jnp.pad anywhere).
    n_cells2 = 20
    k_emb2, k_w2 = jax.random.split(jax.random.PRNGKey(1))
    emb2 = jax.random.normal(k_emb2, (n_cells2, n_emb, n_genes_batch), dtype=jnp.float32)
    weight2 = 0.5 * jax.random.normal(k_w2, (n_genes_total, n_emb), dtype=jnp.float32)
    ref2 = _reference(emb2, gene_ix, weight2, bias1)
    out2 = jax.block_until_ready(
        embedding_to_expression(emb2, gene_ix, weight2, bias1, tile_cells=8))
    assert out2.shape == (n_cells2, n_genes_batch)
    assert jnp.allclose(out2, ref2, atol=1e-5, rtol=1e-5), "ragged-tail mismatch"

    print("KERNEL_OK")
</pallas_src>

<mosaic_0001>
module attributes {stable_mosaic.version = 11 : i64} {
  func.func @_embedding_to_expression_kernel(%arg0: i32, %arg1: i32, %arg2: memref<16x5x4xf32, #tpu.memory_space<vmem>>, %arg3: memref<5x4xf32, #tpu.memory_space<vmem>>, %arg4: memref<1x4xf32, #tpu.memory_space<vmem>>, %arg5: memref<16x4xf32, #tpu.memory_space<vmem>>) attributes {dimension_semantics = [#tpu.dimension_semantics<parallel>, #tpu.dimension_semantics<parallel>], iteration_bounds = array<i64: 1, 1>, scalar_prefetch = 0 : i64, scratch_operands = 0 : i64, tpu.core_type = #tpu.core_type<tc>, window_params = [{transform_indices = @transform_0, window_bounds = array<i64: 16, 5, 4>}, {transform_indices = @transform_1, window_bounds = array<i64: 5, 4>}, {transform_indices = @transform_2, window_bounds = array<i64: 1, 4>}, {transform_indices = @transform_3, window_bounds = array<i64: 16, 4>}]} {
    %c0 = arith.constant 0 : index
    %c0_0 = arith.constant 0 : index
    %0 = vector.load %arg3[%c0, %c0_0] : memref<5x4xf32, #tpu.memory_space<vmem>>, vector<5x4xf32>
    %cst = arith.constant 0.000000e+00 : f32
    %1 = vector.broadcast %cst : f32 to vector<16x4xf32>
    %c0_1 = arith.constant 0 : index
    %c0_2 = arith.constant 0 : index
    %c0_3 = arith.constant 0 : index
    %2 = vector.load %arg2[%c0_1, %c0_2, %c0_3] : memref<16x5x4xf32, #tpu.memory_space<vmem>>, vector<16x1x4xf32>
    %3 = vector.shape_cast %2 : vector<16x1x4xf32> to vector<16x4xf32>
    %4 = vector.extract_strided_slice %0 {offsets = [0, 0], sizes = [1, 4], strides = [1, 1]} : vector<5x4xf32> to vector<1x4xf32>
    %5 = vector.broadcast %4 : vector<1x4xf32> to vector<16x4xf32>
    %6 = arith.mulf %3, %5 : vector<16x4xf32>
    %7 = arith.addf %1, %6 : vector<16x4xf32>
    %c0_4 = arith.constant 0 : index
    %c1 = arith.constant 1 : index
    %c0_5 = arith.constant 0 : index
    %8 = vector.load %arg2[%c0_4, %c1, %c0_5] : memref<16x5x4xf32, #tpu.memory_space<vmem>>, vector<16x1x4xf32>
    %9 = vector.shape_cast %8 : vector<16x1x4xf32> to vector<16x4xf32>
    %10 = vector.extract_strided_slice %0 {offsets = [1, 0], sizes = [1, 4], strides = [1, 1]} : vector<5x4xf32> to vector<1x4xf32>
    %11 = vector.broadcast %10 : vector<1x4xf32> to vector<16x4xf32>
    %12 = arith.mulf %9, %11 : vector<16x4xf32>
    %13 = arith.addf %7, %12 : vector<16x4xf32>
    %c0_6 = arith.constant 0 : index
    %c2 = arith.constant 2 : index
    %c0_7 = arith.constant 0 : index
    %14 = vector.load %arg2[%c0_6, %c2, %c0_7] : memref<16x5x4xf32, #tpu.memory_space<vmem>>, vector<16x1x4xf32>
    %15 = vector.shape_cast %14 : vector<16x1x4xf32> to vector<16x4xf32>
    %16 = vector.extract_strided_slice %0 {offsets = [2, 0], sizes = [1, 4], strides = [1, 1]} : vector<5x4xf32> to vector<1x4xf32>
    %17 = vector.broadcast %16 : vector<1x4xf32> to vector<16x4xf32>
    %18 = arith.mulf %15, %17 : vector<16x4xf32>
    %19 = arith.addf %13, %18 : vector<16x4xf32>
    %c0_8 = arith.constant 0 : index
    %c3 = arith.constant 3 : index
    %c0_9 = arith.constant 0 : index
    %20 = vector.load %arg2[%c0_8, %c3, %c0_9] : memref<16x5x4xf32, #tpu.memory_space<vmem>>, vector<16x1x4xf32>
    %21 = vector.shape_cast %20 : vector<16x1x4xf32> to vector<16x4xf32>
    %22 = vector.extract_strided_slice %0 {offsets = [3, 0], sizes = [1, 4], strides = [1, 1]} : vector<5x4xf32> to vector<1x4xf32>
    %23 = vector.broadcast %22 : vector<1x4xf32> to vector<16x4xf32>
    %24 = arith.mulf %21, %23 : vector<16x4xf32>
    %25 = arith.addf %19, %24 : vector<16x4xf32>
    %c0_10 = arith.constant 0 : index
    %c4 = arith.constant 4 : index
    %c0_11 = arith.constant 0 : index
    %26 = vector.load %arg2[%c0_10, %c4, %c0_11] : memref<16x5x4xf32, #tpu.memory_space<vmem>>, vector<16x1x4xf32>
    %27 = vector.shape_cast %26 : vector<16x1x4xf32> to vector<16x4xf32>
    %28 = vector.extract_strided_slice %0 {offsets = [4, 0], sizes = [1, 4], strides = [1, 1]} : vector<5x4xf32> to vector<1x4xf32>
    %29 = vector.broadcast %28 : vector<1x4xf32> to vector<16x4xf32>
    %30 = arith.mulf %27, %29 : vector<16x4xf32>
    %31 = arith.addf %25, %30 : vector<16x4xf32>
    %c0_12 = arith.constant 0 : index
    %c0_13 = arith.constant 0 : index
    %32 = vector.load %arg4[%c0_12, %c0_13] : memref<1x4xf32, #tpu.memory_space<vmem>>, vector<1x4xf32>
    %33 = vector.broadcast %32 : vector<1x4xf32> to vector<16x4xf32>
    %34 = arith.addf %31, %33 : vector<16x4xf32>
    %c0_14 = arith.constant 0 : index
    %c0_15 = arith.constant 0 : index
    %35 = vector.load %arg5[%c0_14, %c0_15] : memref<16x4xf32, #tpu.memory_space<vmem>>, vector<16x4xf32>
    tpu.vector_store %arg5[%c0_14, %c0_15], %34 {strides = array<i32>} : memref<16x4xf32, #tpu.memory_space<vmem>>, vector<16x4xf32>,
    return
  }
  func.func @transform_0(%arg0: i32, %arg1: i32) -> (i32, i32, i32) {
    %c0_i32 = arith.constant 0 : i32
    %c0_i32_0 = arith.constant 0 : i32
    return %arg1, %c0_i32, %arg0 : i32, i32, i32
  }
  func.func @transform_1(%arg0: i32, %arg1: i32) -> (i32, i32) {
    %c0_i32 = arith.constant 0 : i32
    %c0_i32_0 = arith.constant 0 : i32
    return %c0_i32, %arg0 : i32, i32
  }
  func.func @transform_2(%arg0: i32, %arg1: i32) -> (i32, i32) {
    %c0_i32 = arith.constant 0 : i32
    %c0_i32_0 = arith.constant 0 : i32
    return %c0_i32, %arg0 : i32, i32
  }
  func.func @transform_3(%arg0: i32, %arg1: i32) -> (i32, i32) {
    %c0_i32 = arith.constant 0 : i32
    return %arg1, %arg0 : i32, i32
  }
}

</mosaic_0001>

<llo_original>
// kernel: tpu_custom_call.1
$region0: #{tpu_custom_call.1}
  #allocation0 [shape = 'u32[]', space=smem, size = 0x4, offset = 0x4, fixed_abs, tag = 'smem constant byte address 0x4 - core index']
  #allocation1 [shape = 'u32[144,128]{1,0:T(1,128)}', space=vmem, size = 0x12000, scoped, tag = 'internal scratch']
  %s0 = inlined_call_operand.vmem [shape: f32[16,5,4], index: 0, kind: input, shape index: {}]
  %s1 = inlined_call_operand.vmem [shape: f32[5,4], index: 1, kind: input, shape index: {}]
  %s2 = inlined_call_operand.vmem [shape: f32[1,4], index: 2, kind: input, shape index: {}]
  %s3 = inlined_call_operand.vmem [shape: f32[16,4], index: 3, kind: output, shape index: {}]
  %s4 = sld [smem:[#allocation0]]
  $region22: #{tpu_custom_call.1} parent=0
    _
  %s6 = ssub.s32 1, %s4
  %s7 = scalar_select 0, %s6, %s4
  // Predicated region
  $region2: #{tpu_custom_call.1} parent=0 // pred_check
    _
  $region3: #{tpu_custom_call.1} parent=0 // pred_check_branch
    %9 = sbr.rel (0) target = $region5
  $region4: #{tpu_custom_call.1} parent=0 // pred_region
    _
  $region5: #{tpu_custom_call.1} parent=0 // pred_fallthru
    _
  // Predicated region
  $region6: #{tpu_custom_call.1} parent=0 // pred_check
    _
  $region7: #{tpu_custom_call.1} parent=0 // pred_check_branch
    %11 = sbr.rel (0) target = $region9
  $region8: #{tpu_custom_call.1} parent=0 // pred_region
    _
  $region9: #{tpu_custom_call.1} parent=0 // pred_fallthru
    _
  // Predicated region
  $region10: #{tpu_custom_call.1} parent=0 // pred_check
    _
  $region11: #{tpu_custom_call.1} parent=0 // pred_check_branch
    %13 = sbr.rel (0) target = $region13
  $region12: #{tpu_custom_call.1} parent=0 // pred_region
    _
  $region13: #{tpu_custom_call.1} parent=0 // pred_fallthru
    _
  %v14 = vld [vmem:[%s1] sm:$0x1f]
  %v15 = vld [vmem:[%s0] sm:$0x1]
  %v16 = vld [vmem:[%s0 + $0x8] sm:$0x1]
  %v17 = vld [vmem:[%s0 + $0x10] sm:$0x1]
  %v18 = vld [vmem:[%s0 + $0x18] sm:$0x1]
  %v19 = vld [vmem:[%s0 + $0x20] sm:$0x1]
  %v20 = vld [vmem:[%s0 + $0x28] sm:$0x1]
  %v21 = vld [vmem:[%s0 + $0x30] sm:$0x1]
  %v22 = vld [vmem:[%s0 + $0x38] sm:$0x1]
  %v23 = vld [vmem:[%s0 + $0x40] sm:$0x1]
  %v24 = vld [vmem:[%s0 + $0x48] sm:$0x1]
  %v25 = vld [vmem:[%s0 + $0x50] sm:$0x1]
  %v26 = vld [vmem:[%s0 + $0x58] sm:$0x1]
  %v27 = vld [vmem:[%s0 + $0x60] sm:$0x1]
  %v28 = vld [vmem:[%s0 + $0x68] sm:$0x1]
  %v29 = vld [vmem:[%s0 + $0x70] sm:$0x1]
  %v30 = vld [vmem:[%s0 + $0x78] sm:$0x1]
  %v31 = vlaneseq
  %v32 = vshrl.u32 %v31, 7
  %v33 = vsub.s32 0, %v32
  %v34 = vrot.slane %v14, %v33
  %v35 = vmul.f32 %v15, %v34
  %v36 = vmul.f32 %v16, %v34
  %v37 = vmul.f32 %v17, %v34
  %v38 = vmul.f32 %v18, %v34
  %v39 = vmul.f32 %v19, %v34
  %v40 = vmul.f32 %v20, %v34
  %v41 = vmul.f32 %v21, %v34
  %v42 = vmul.f32 %v22, %v34
  %v43 = vmul.f32 %v23, %v34
  %v44 = vmul.f32 %v24, %v34
  %v45 = vmul.f32 %v25, %v34
  %v46 = vmul.f32 %v26, %v34
  %v47 = vmul.f32 %v27, %v34
  %v48 = vmul.f32 %v28, %v34
  %v49 = vmul.f32 %v29, %v34
  %v50 = vmul.f32 %v30, %v34
  %v51 = vadd.f32 %v35, 0.0
  %v52 = vadd.f32 %v36, 0.0
  %v53 = vadd.f32 %v37, 0.0
  %v54 = vadd.f32 %v38, 0.0
  %v55 = vadd.f32 %v39, 0.0
  %v56 = vadd.f32 %v40, 0.0
  %v57 = vadd.f32 %v41, 0.0
  %v58 = vadd.f32 %v42, 0.0
  %v59 = vadd.f32 %v43, 0.0
  %v60 = vadd.f32 %v44, 0.0
  %v61 = vadd.f32 %v45, 0.0
  %v62 = vadd.f32 %v46, 0.0
  %v63 = vadd.f32 %v47, 0.0
  %v64 = vadd.f32 %v48, 0.0
  %v65 = vadd.f32 %v49, 0.0
  %v66 = vadd.f32 %v50, 0.0
  %v67 = vld [vmem:[%s0 + $0x1] sm:$0x1]
  %v68 = vld [vmem:[%s0 + $0x9] sm:$0x1]
  %v69 = vld [vmem:[%s0 + $0x11] sm:$0x1]
  %v70 = vld [vmem:[%s0 + $0x19] sm:$0x1]
  %v71 = vld [vmem:[%s0 + $0x21] sm:$0x1]
  %v72 = vld [vmem:[%s0 + $0x29] sm:$0x1]
  %v73 = vld [vmem:[%s0 + $0x31] sm:$0x1]
  %v74 = vld [vmem:[%s0 + $0x39] sm:$0x1]
  %v75 = vld [vmem:[%s0 + $0x41] sm:$0x1]
  %v76 = vld [vmem:[%s0 + $0x49] sm:$0x1]
  %v77 = vld [vmem:[%s0 + $0x51] sm:$0x1]
  %v78 = vld [vmem:[%s0 + $0x59] sm:$0x1]
  %v79 = vld [vmem:[%s0 + $0x61] sm:$0x1]
  %v80 = vld [vmem:[%s0 + $0x69] sm:$0x1]
  %v81 = vld [vmem:[%s0 + $0x71] sm:$0x1]
  %v82 = vld [vmem:[%s0 + $0x79] sm:$0x1]
  %v83 = vlaneseq
  %v84 = vshrl.u32 %v83, 7
  %v85 = vsub.s32 1, %v84
  %v86 = vrot.slane %v14, %v85
  %v87 = vmul.f32 %v67, %v86
  %v88 = vmul.f32 %v68, %v86
  %v89 = vmul.f32 %v69, %v86
  %v90 = vmul.f32 %v70, %v86
  %v91 = vmul.f32 %v71, %v86
  %v92 = vmul.f32 %v72, %v86
  %v93 = vmul.f32 %v73, %v86
  %v94 = vmul.f32 %v74, %v86
  %v95 = vmul.f32 %v75, %v86
  %v96 = vmul.f32 %v76, %v86
  %v97 = vmul.f32 %v77, %v86
  %v98 = vmul.f32 %v78, %v86
  %v99 = vmul.f32 %v79, %v86
  %v100 = vmul.f32 %v80, %v86
  %v101 = vmul.f32 %v81, %v86
  %v102 = vmul.f32 %v82, %v86
  %v103 = vadd.f32 %v51, %v87
  %v104 = vadd.f32 %v52, %v88
  %v105 = vadd.f32 %v53, %v89
  %v106 = vadd.f32 %v54, %v90
  %v107 = vadd.f32 %v55, %v91
  %v108 = vadd.f32 %v56, %v92
  %v109 = vadd.f32 %v57, %v93
  %v110 = vadd.f32 %v58, %v94
  %v111 = vadd.f32 %v59, %v95
  %v112 = vadd.f32 %v60, %v96
  %v113 = vadd.f32 %v61, %v97
  %v114 = vadd.f32 %v62, %v98
  %v115 = vadd.f32 %v63, %v99
  %v116 = vadd.f32 %v64, %v100
  %v117 = vadd.f32 %v65, %v101
  %v118 = vadd.f32 %v66, %v102
  %v119 = vld [vmem:[%s0 + $0x2] sm:$0x1]
  %v120 = vld [vmem:[%s0 + $0xa] sm:$0x1]
  %v121 = vld [vmem:[%s0 + $0x12] sm:$0x1]
  %v122 = vld [vmem:[%s0 + $0x1a] sm:$0x1]
  %v123 = vld [vmem:[%s0 + $0x22] sm:$0x1]
  %v124 = vld [vmem:[%s0 + $0x2a] sm:$0x1]
  %v125 = vld [vmem:[%s0 + $0x32] sm:$0x1]
  %v126 = vld [vmem:[%s0 + $0x3a] sm:$0x1]
  %v127 = vld [vmem:[%s0 + $0x42] sm:$0x1]
  %v128 = vld [vmem:[%s0 + $0x4a] sm:$0x1]
  %v129 = vld [vmem:[%s0 + $0x52] sm:$0x1]
  %v130 = vld [vmem:[%s0 + $0x5a] sm:$0x1]
  %v131 = vld [vmem:[%s0 + $0x62] sm:$0x1]
  %v132 = vld [vmem:[%s0 + $0x6a] sm:$0x1]
  %v133 = vld [vmem:[%s0 + $0x72] sm:$0x1]
  %v134 = vld [vmem:[%s0 + $0x7a] sm:$0x1]
  %v135 = vlaneseq
  %v136 = vshrl.u32 %v135, 7
  %v137 = vsub.s32 2, %v136
  %v138 = vrot.slane %v14, %v137
  %v139 = vmul.f32 %v119, %v138
  %v140 = vmul.f32 %v120, %v138
  %v141 = vmul.f32 %v121, %v138
  %v142 = vmul.f32 %v122, %v138
  %v143 = vmul.f32 %v123, %v138
  %v144 = vmul.f32 %v124, %v138
  %v145 = vmul.f32 %v125, %v138
  %v146 = vmul.f32 %v126, %v138
  %v147 = vmul.f32 %v127, %v138
  %v148 = vmul.f32 %v128, %v138
  %v149 = vmul.f32 %v129, %v138
  %v150 = vmul.f32 %v130, %v138
  %v151 = vmul.f32 %v131, %v138
  %v152 = vmul.f32 %v132, %v138
  %v153 = vmul.f32 %v133, %v138
  %v154 = vmul.f32 %v134, %v138
  %v155 = vadd.f32 %v103, %v139
  %v156 = vadd.f32 %v104, %v140
  %v157 = vadd.f32 %v105, %v141
  %v158 = vadd.f32 %v106, %v142
  %v159 = vadd.f32 %v107, %v143
  %v160 = vadd.f32 %v108, %v144
  %v161 = vadd.f32 %v109, %v145
  %v162 = vadd.f32 %v110, %v146
  %v163 = vadd.f32 %v111, %v147
  %v164 = vadd.f32 %v112, %v148
  %v165 = vadd.f32 %v113, %v149
  %v166 = vadd.f32 %v114, %v150
  %v167 = vadd.f32 %v115, %v151
  %v168 = vadd.f32 %v116, %v152
  %v169 = vadd.f32 %v117, %v153
  %v170 = vadd.f32 %v118, %v154
  %v171 = vld [vmem:[%s0 + $0x3] sm:$0x1]
  %v172 = vld [vmem:[%s0 + $0xb] sm:$0x1]
  %v173 = vld [vmem:[%s0 + $0x13] sm:$0x1]
  %v174 = vld [vmem:[%s0 + $0x1b] sm:$0x1]
  %v175 = vld [vmem:[%s0 + $0x23] sm:$0x1]
  %v176 = vld [vmem:[%s0 + $0x2b] sm:$0x1]
  %v177 = vld [vmem:[%s0 + $0x33] sm:$0x1]
  %v178 = vld [vmem:[%s0 + $0x3b] sm:$0x1]
  %v179 = vld [vmem:[%s0 + $0x43] sm:$0x1]
  %v180 = vld [vmem:[%s0 + $0x4b] sm:$0x1]
  %v181 = vld [vmem:[%s0 + $0x53] sm:$0x1]
  %v182 = vld [vmem:[%s0 + $0x5b] sm:$0x1]
  %v183 = vld [vmem:[%s0 + $0x63] sm:$0x1]
  %v184 = vld [vmem:[%s0 + $0x6b] sm:$0x1]
  %v185 = vld [vmem:[%s0 + $0x73] sm:$0x1]
  %v186 = vld [vmem:[%s0 + $0x7b] sm:$0x1]
  %v187 = vlaneseq
  %v188 = vshrl.u32 %v187, 7
  %v189 = vsub.s32 3, %v188
  %v190 = vrot.slane %v14, %v189
  %v191 = vmul.f32 %v171, %v190
  %v192 = vmul.f32 %v172, %v190
  %v193 = vmul.f32 %v173, %v190
  %v194 = vmul.f32 %v174, %v190
  %v195 = vmul.f32 %v175, %v190
  %v196 = vmul.f32 %v176, %v190
  %v197 = vmul.f32 %v177, %v190
  %v198 = vmul.f32 %v178, %v190
  %v199 = vmul.f32 %v179, %v190
  %v200 = vmul.f32 %v180, %v190
  %v201 = vmul.f32 %v181, %v190
  %v202 = vmul.f32 %v182, %v190
  %v203 = vmul.f32 %v183, %v190
  %v204 = vmul.f32 %v184, %v190
  %v205 = vmul.f32 %v185, %v190
  %v206 = vmul.f32 %v186, %v190
  %v207 = vadd.f32 %v155, %v191
  %v208 = vadd.f32 %v156, %v192
  %v209 = vadd.f32 %v157, %v193
  %v210 = vadd.f32 %v158, %v194
  %v211 = vadd.f32 %v159, %v195
  %v212 = vadd.f32 %v160, %v196
  %v213 = vadd.f32 %v161, %v197
  %v214 = vadd.f32 %v162, %v198
  %v215 = vadd.f32 %v163, %v199
  %v216 = vadd.f32 %v164, %v200
  %v217 = vadd.f32 %v165, %v201
  %v218 = vadd.f32 %v166, %v202
  %v219 = vadd.f32 %v167, %v203
  %v220 = vadd.f32 %v168, %v204
  %v221 = vadd.f32 %v169, %v205
  %v222 = vadd.f32 %v170, %v206
  %v223 = vld [vmem:[%s0 + $0x4] sm:$0x1]
  %v224 = vld [vmem:[%s0 + $0xc] sm:$0x1]
  %v225 = vld [vmem:[%s0 + $0x14] sm:$0x1]
  %v226 = vld [vmem:[%s0 + $0x1c] sm:$0x1]
  %v227 = vld [vmem:[%s0 + $0x24] sm:$0x1]
  %v228 = vld [vmem:[%s0 + $0x2c] sm:$0x1]
  %v229 = vld [vmem:[%s0 + $0x34] sm:$0x1]
  %v230 = vld [vmem:[%s0 + $0x3c] sm:$0x1]
  %v231 = vld [vmem:[%s0 + $0x44] sm:$0x1]
  %v232 = vld [vmem:[%s0 + $0x4c] sm:$0x1]
  %v233 = vld [vmem:[%s0 + $0x54] sm:$0x1]
  %v234 = vld [vmem:[%s0 + $0x5c] sm:$0x1]
  %v235 = vld [vmem:[%s0 + $0x64] sm:$0x1]
  %v236 = vld [vmem:[%s0 + $0x6c] sm:$0x1]
  %v237 = vld [vmem:[%s0 + $0x74] sm:$0x1]
  %v238 = vld [vmem:[%s0 + $0x7c] sm:$0x1]
  %v239 = vlaneseq
  %v240 = vshrl.u32 %v239, 7
  %v241 = vsub.s32 4, %v240
  %v242 = vrot.slane %v14, %v241
  %v243 = vmul.f32 %v223, %v242
  %v244 = vmul.f32 %v224, %v242
  %v245 = vmul.f32 %v225, %v242
  %v246 = vmul.f32 %v226, %v242
  %v247 = vmul.f32 %v227, %v242
  %v248 = vmul.f32 %v228, %v242
  %v249 = vmul.f32 %v229, %v242
  %v250 = vmul.f32 %v230, %v242
  %v251 = vmul.f32 %v231, %v242
  %v252 = vmul.f32 %v232, %v242
  %v253 = vmul.f32 %v233, %v242
  %v254 = vmul.f32 %v234, %v242
  %v255 = vmul.f32 %v235, %v242
  %v256 = vmul.f32 %v236, %v242
  %v257 = vmul.f32 %v237, %v242
  %v258 = vmul.f32 %v238, %v242
  %v259 = vadd.f32 %v207, %v243
  %v260 = vadd.f32 %v208, %v244
  %v261 = vadd.f32 %v209, %v245
  %v262 = vadd.f32 %v210, %v246
  %v263 = vadd.f32 %v211, %v247
  %v264 = vadd.f32 %v212, %v248
  %v265 = vadd.f32 %v213, %v249
  %v266 = vadd.f32 %v214, %v250
  %v267 = vadd.f32 %v215, %v251
  %v268 = vadd.f32 %v216, %v252
  %v269 = vadd.f32 %v217, %v253
  %v270 = vadd.f32 %v218, %v254
  %v271 = vadd.f32 %v219, %v255
  %v272 = vadd.f32 %v220, %v256
  %v273 = vadd.f32 %v221, %v257
  %v274 = vadd.f32 %v222, %v258
  %v275 = vld [vmem:[%s2] sm:$0x1]
  %v277 = vlaneseq
  %v278 = vshrl.u32 %v277, 7
  %v279 = vsub.s32 0, %v278
  %v280 = vrot.slane %v275, %v279
  %v282 = vadd.f32 %v259, %v280
  %v283 = vadd.f32 %v260, %v280
  %v284 = vadd.f32 %v261, %v280
  %v285 = vadd.f32 %v262, %v280
  %v286 = vadd.f32 %v263, %v280
  %v287 = vadd.f32 %v264, %v280
  %v288 = vadd.f32 %v265, %v280
  %v289 = vadd.f32 %v266, %v280
  %v290 = vadd.f32 %v267, %v280
  %v291 = vadd.f32 %v268, %v280
  %v292 = vadd.f32 %v269, %v280
  %v293 = vadd.f32 %v270, %v280
  %v294 = vadd.f32 %v271, %v280
  %v295 = vadd.f32 %v272, %v280
  %v296 = vadd.f32 %v273, %v280
  %v297 = vadd.f32 %v274, %v280
  %v314 = vrot.slane %v283, 7
  %vm315 = vcmask 1041409
  %v316 = vsel %vm315, %v314, %v282
  %v317 = vrot.slane %v284, 6
  %vm318 = vcmask 1042434
  %v319 = vsel %vm318, %v317, %v316
  %v320 = vrot.slane %v285, 5
  %vm321 = vcmask 1043459
  %v322 = vsel %vm321, %v320, %v319
  %v323 = vrot.slane %v286, 4
  %vm324 = vcmask 1044484
  %v325 = vsel %vm324, %v323, %v322
  %v326 = vrot.slane %v287, 3
  %vm327 = vcmask 1045509
  %v328 = vsel %vm327, %v326, %v325
  %v329 = vrot.slane %v288, 2
  %vm330 = vcmask 1046534
  %v331 = vsel %vm330, %v329, %v328
  %v332 = vrot.slane %v289, 1
  %vm333 = vcmask 1047559
  %v334 = vsel %vm333, %v332, %v331
  %v335 = vrot.slane %v291, 7
  %v336 = vsel %vm315, %v335, %v290
  %v337 = vrot.slane %v292, 6
  %v338 = vsel %vm318, %v337, %v336
  %v339 = vrot.slane %v293, 5
  %v340 = vsel %vm321, %v339, %v338
  %v341 = vrot.slane %v294, 4
  %v342 = vsel %vm324, %v341, %v340
  %v343 = vrot.slane %v295, 3
  %v344 = vsel %vm327, %v343, %v342
  %v345 = vrot.slane %v296, 2
  %v346 = vsel %vm330, %v345, %v344
  %v347 = vrot.slane %v297, 1
  %v348 = vsel %vm333, %v347, %v346
  %vm351 = vcmask 31744
  %352 = vst.msk [vmem:[%s3] sm:$0xff] %vm351, %v334
  %353 = vst.msk [vmem:[%s3 + $0x8] sm:$0xff] %vm351, %v348
  // Predicated region
  $region14: #{tpu_custom_call.1} parent=0 // pred_check
    _
  $region15: #{tpu_custom_call.1} parent=0 // pred_check_branch
    %355 = sbr.rel (0) target = $region17
  $region16: #{tpu_custom_call.1} parent=0 // pred_region
    _
  $region17: #{tpu_custom_call.1} parent=0 // pred_fallthru
    _
  // Predicated region
  $region18: #{tpu_custom_call.1} parent=0 // pred_check
    _
  $region19: #{tpu_custom_call.1} parent=0 // pred_check_branch
    %357 = sbr.rel (0) target = $region21
  $region20: #{tpu_custom_call.1} parent=0 // pred_region
    _
  $region21: #{tpu_custom_call.1} parent=0 // pred_fallthru
    _

</llo_original>
